<compile_context>
chip_gen: v5e
topology: v5e:2x2
jax: 0.10.0
libtpu: 0.0.40
codegen_flags: <defaults>
</compile_context>

<pallas_src>
import functools

import jax
import jax.numpy as jnp
from jax.experimental import pallas as pl
from jax.experimental.pallas import tpu as pltpu


_TARGET_BLOCK_BYTES = 4 * 1024 * 1024   # sweet spot on v5e/v6e/v7x
_MIN_BLOCK_BYTES = 2 * 1024 * 1024      # never shrink below this for more steps
_LIVE_VMEM_BUDGET = 44 * 1024 * 1024    # 4 pipeline bufs + f32 temps, fits v7x


def _simam_kernel(x_ref, o_ref, *, e_lambda, eps, inv_n, compute_dtype):
    # x_ref: (row_tile, n) block; each row is one (batch, channel) spatial plane.
    x = x_ref[...]
    xf = x.astype(jnp.float32)

    # Per-row statistics in f32.  Centered second moment avoids the
    # E[x^2] - mean^2 cancellation for large-mean activations.
    mean = jnp.sum(xf, axis=-1, keepdims=True) * inv_n          # (rt, 1)
    d32 = xf - mean
    var = jnp.sum(d32 * d32, axis=-1, keepdims=True) * inv_n    # (rt, 1)
    inv_var = pl.reciprocal(var + eps, approx=False)            # tiny exact divide

    # Elementwise path in compute_dtype (bf16 on v6e/v7x for bf16 inputs,
    # f32 otherwise). astype is a no-op when dtypes already match.
    cd = compute_dtype
    xc = x.astype(cd)
    dc = d32.astype(cd)
    energy = (dc * dc) * inv_var.astype(cd) + e_lambda * xc
    # sigmoid(-energy) == 1 / (1 + exp(energy)): folds the negate; exp and the
    # elementwise reciprocal go to the EUP (otherwise idle in this kernel).
    attention = pl.reciprocal(1.0 + jnp.exp(energy), approx=False)
    o_ref[...] = (xc * attention).astype(o_ref.dtype)


def _live_vmem_bytes(row_tile, n, itemsize):
    """Estimated live VMEM: in+out double-buffered blocks + f32 temporaries."""
    block = row_tile * n * itemsize
    f32_block = row_tile * n * 4
    return 4 * block + 3 * f32_block


def _choose_row_tile(rows, n, itemsize):
    """Pick the sublane (row) block size.

    ~4 MiB target, rounded to the dtype's sublane packing granule, capped to
    the array extent, kept inside a total-live-VMEM budget that also fits
    v7x's 64 MiB VMEM per TC, and mildly adjusted so dual-TC parts get an
    even number of grid steps when possible.
    """
    granule = max(8, 32 // int(itemsize))       # 8 f32, 16 bf16, 32 int8/fp8
    if rows <= granule:
        return rows                              # full-extent block (always legal)

    rows_floor = (rows // granule) * granule     # never exceed the array extent
    rt = (_TARGET_BLOCK_BYTES // (n * itemsize)) // granule * granule
    rt = max(granule, int(rt))
    rt = min(rt, rows_floor)

    # Keep total live VMEM (pipeline buffers + f32 temps) inside budget.
    while rt > granule and _live_vmem_bytes(rt, n, itemsize) > _LIVE_VMEM_BUDGET:
        rt = max(granule, (rt // 2) // granule * granule)

    # Prefer >= 4 grid steps (2 per TensorCore on dual-core parts) but never
    # shrink blocks below ~2 MiB just to manufacture steps.
    while (pl.cdiv(rows, rt) < 4 and rt > granule
           and (rt // 2) * n * itemsize >= _MIN_BLOCK_BYTES):
        rt = max(granule, (rt // 2) // granule * granule)

    # Nudge an odd step count to even so both TCs on v7x get equal work.
    steps = pl.cdiv(rows, rt)
    if steps > 1 and steps % 2 == 1:
        rt_alt = ((pl.cdiv(rows, steps + 1) + granule - 1) // granule) * granule
        if granule <= rt_alt <= rows_floor and pl.cdiv(rows, rt_alt) % 2 == 0:
            rt = rt_alt
    return rt


def _elementwise_dtype(x_dtype):
    """bf16 elementwise math only on chips with a bf16 VPU/EUP (v6e / v7x)."""
    if jnp.dtype(x_dtype) != jnp.dtype(jnp.bfloat16):
        return jnp.float32
    try:
        kind = jax.devices()[0].device_kind.lower()
    except Exception:
        return jnp.float32
    if any(g in kind for g in ("v2", "v3", "v4", "v5")):
        return jnp.float32           # no bf16 VPU/EUP on these generations
    return jnp.bfloat16


def simam(x, e_lambda=0.0001, eps=1e-05):
    """SimAM attention. x: (B, C, H, W) -> (B, C, H, W), same dtype."""
    B, C, H, W = x.shape
    n = H * W
    rows = B * C
    itemsize = jnp.dtype(x.dtype).itemsize

    row_tile = _choose_row_tile(rows, n, itemsize)
    grid = (pl.cdiv(rows, row_tile),)

    # Derive the scoped-VMEM limit from the actual block choice (>= 32 MiB so
    # v5e's 16 MiB default never constrains us; <= 64 MiB so v7x is safe).
    live = _live_vmem_bytes(row_tile, n, itemsize) + (1 << 20)
    vmem_limit = int(min(max(32 * 1024 * 1024, live), 64 * 1024 * 1024))

    x2 = x.reshape(rows, n)   # metadata-only reshape, no HBM copy

    kernel = functools.partial(
        _simam_kernel,
        e_lambda=e_lambda,
        eps=eps,
        inv_n=1.0 / n,
        compute_dtype=_elementwise_dtype(x.dtype),
    )

    out2 = pl.pallas_call(
        kernel,
        out_shape=jax.ShapeDtypeStruct((rows, n), x.dtype),
        grid_spec=pltpu.PrefetchScalarGridSpec(
            num_scalar_prefetch=0,
            grid=grid,
            in_specs=[pl.BlockSpec((row_tile, n), lambda i: (i, 0))],
            out_specs=pl.BlockSpec((row_tile, n), lambda i: (i, 0)),
        ),
        compiler_params=pltpu.CompilerParams(
            dimension_semantics=("parallel",),
            vmem_limit_bytes=vmem_limit,
        ),
        cost_estimate=pl.CostEstimate(
            flops=int(10 * rows * n),
            transcendentals=int(rows * n),          # exp per element (sigmoid)
            bytes_accessed=int(2 * rows * n * itemsize),
        ),
    )(x2)

    return out2.reshape(B, C, H, W)


def _simam_ref(x, e_lambda=0.0001, eps=1e-05):
    """Pure-JAX reference mirroring the PyTorch forward exactly."""
    xf = x.astype(jnp.float32)
    mean = jnp.mean(xf, axis=(2, 3), keepdims=True)
    var = jnp.mean((xf - mean) ** 2, axis=(2, 3), keepdims=True)
    energy = (xf - mean) ** 2 / (var + eps) + e_lambda * xf
    attention = jax.nn.sigmoid(-energy)
    return (xf * attention).astype(x.dtype)


if __name__ == "__main__":
    key = jax.random.PRNGKey(0)
    k1, k2 = jax.random.split(key)

    # Primary shape from the module spec (lane-dense: H*W = 256).
    x1 = jax.random.normal(k1, (2, 4, 16, 16), dtype=jnp.float32)
    out1 = jax.block_until_ready(simam(x1))
    ref1 = _simam_ref(x1)
    assert out1.shape == x1.shape and out1.dtype == x1.dtype
    assert jnp.allclose(out1, ref1, atol=1e-5, rtol=1e-5), "mismatch (16x16)"

    # Ragged rows (15 not a multiple of 8) and small n (49): exercises the
    # masked edge block and masked lane stores.
    x2 = jax.random.normal(k2, (3, 5, 7, 7), dtype=jnp.float32)
    out2 = jax.block_until_ready(simam(x2))
    ref2 = _simam_ref(x2)
    assert jnp.allclose(out2, ref2, atol=1e-5, rtol=1e-5), "mismatch (7x7)"

    print("KERNEL_OK")
</pallas_src>

<mosaic_0001>
module attributes {stable_mosaic.version = 11 : i64} {
  func.func @_simam_kernel(%arg0: i32, %arg1: memref<8x256xf32, #tpu.memory_space<vmem>>, %arg2: memref<8x256xf32, #tpu.memory_space<vmem>>) attributes {dimension_semantics = [#tpu.dimension_semantics<parallel>], iteration_bounds = array<i64: 1>, scalar_prefetch = 0 : i64, scratch_operands = 0 : i64, tpu.core_type = #tpu.core_type<tc>, window_params = [{transform_indices = @transform_0, window_bounds = array<i64: 8, 256>}, {transform_indices = @transform_1, window_bounds = array<i64: 8, 256>}]} {
    %c0 = arith.constant 0 : index
    %c0_0 = arith.constant 0 : index
    %0 = vector.load %arg1[%c0, %c0_0] : memref<8x256xf32, #tpu.memory_space<vmem>>, vector<8x256xf32>
    %cst = arith.constant dense<0.000000e+00> : vector<8xf32>
    %1 = vector.multi_reduction <add>, %0, %cst [1] : vector<8x256xf32> to vector<8xf32>
    %2 = vector.shape_cast %1 : vector<8xf32> to vector<8x1xf32>
    %cst_1 = arith.constant 3.906250e-03 : f32
    %3 = vector.broadcast %cst_1 : f32 to vector<8x1xf32>
    %4 = arith.mulf %2, %3 : vector<8x1xf32>
    %5 = vector.broadcast %4 : vector<8x1xf32> to vector<8x256xf32>
    %6 = arith.subf %0, %5 : vector<8x256xf32>
    %7 = arith.mulf %6, %6 : vector<8x256xf32>
    %cst_2 = arith.constant dense<0.000000e+00> : vector<8xf32>
    %8 = vector.multi_reduction <add>, %7, %cst_2 [1] : vector<8x256xf32> to vector<8xf32>
    %9 = vector.shape_cast %8 : vector<8xf32> to vector<8x1xf32>
    %cst_3 = arith.constant 3.906250e-03 : f32
    %10 = vector.broadcast %cst_3 : f32 to vector<8x1xf32>
    %11 = arith.mulf %9, %10 : vector<8x1xf32>
    %cst_4 = arith.constant 9.99999974E-6 : f32
    %12 = vector.broadcast %cst_4 : f32 to vector<8x1xf32>
    %13 = arith.addf %11, %12 : vector<8x1xf32>
    %14 = tpu.reciprocal %13 : vector<8x1xf32> -> vector<8x1xf32>
    %15 = arith.mulf %6, %6 : vector<8x256xf32>
    %16 = vector.broadcast %14 : vector<8x1xf32> to vector<8x256xf32>
    %17 = arith.mulf %15, %16 : vector<8x256xf32>
    %cst_5 = arith.constant 9.99999974E-5 : f32
    %18 = vector.broadcast %cst_5 : f32 to vector<8x256xf32>
    %19 = arith.mulf %18, %0 : vector<8x256xf32>
    %20 = arith.addf %17, %19 : vector<8x256xf32>
    %21 = math.exp %20 : vector<8x256xf32>
    %cst_6 = arith.constant 1.000000e+00 : f32
    %22 = vector.broadcast %cst_6 : f32 to vector<8x256xf32>
    %23 = arith.addf %22, %21 : vector<8x256xf32>
    %24 = tpu.reciprocal %23 : vector<8x256xf32> -> vector<8x256xf32>
    %25 = arith.mulf %0, %24 : vector<8x256xf32>
    %c0_7 = arith.constant 0 : index
    %c0_8 = arith.constant 0 : index
    %26 = vector.load %arg2[%c0_7, %c0_8] : memref<8x256xf32, #tpu.memory_space<vmem>>, vector<8x256xf32>
    tpu.vector_store %arg2[%c0_7, %c0_8], %25 {strides = array<i32>} : memref<8x256xf32, #tpu.memory_space<vmem>>, vector<8x256xf32>,
    return
  }
  func.func @transform_0(%arg0: i32) -> (i32, i32) {
    %c0_i32 = arith.constant 0 : i32
    %c0_i32_0 = arith.constant 0 : i32
    return %arg0, %c0_i32 : i32, i32
  }
  func.func @transform_1(%arg0: i32) -> (i32, i32) {
    %c0_i32 = arith.constant 0 : i32
    %c0_i32_0 = arith.constant 0 : i32
    return %arg0, %c0_i32 : i32, i32
  }
}

</mosaic_0001>

<llo_original>
// kernel: tpu_custom_call.1
$region0: #{tpu_custom_call.1}
  #allocation0 [shape = 'u32[]', space=smem, size = 0x4, offset = 0x4, fixed_abs, tag = 'smem constant byte address 0x4 - core index']
  #allocation1 [shape = 'u32[72,128]{1,0:T(1,128)}', space=vmem, size = 0x9000, scoped, tag = 'internal scratch']
  %s0 = inlined_call_operand.hbm [shape: f32[8,256], index: 0, kind: input, shape index: {}]
  %s1 = inlined_call_operand.hbm [shape: f32[8,256], index: 1, kind: output, shape index: {}]
  %s2 = sld [smem:[#allocation0]]
  $region18: #{tpu_custom_call.1} parent=0
    _
  %s4 = ssub.s32 1, %s2
  %s5 = scalar_select 0, %s4, %s2
  $region1: #{tpu_custom_call.1} parent=0
    #allocation2 [shape = 'u8[8192]{0}', space=vmem, size = 0x2000, scoped, tag = 'input window, operand 0, single buffered']
    #allocation3 [shape = 's32[1]{0}', space=sflag, size = 0x4, scoped, tag = 'scoped memory for tpu_custom_call.1']
    #allocation4 [shape = 's32[1]{0}', space=sflag, size = 0x4, scoped, tag = 'scoped memory for tpu_custom_call.1']
    #allocation5 [shape = 'u8[8192]{0}', space=vmem, size = 0x2000, scoped, tag = 'output window, operand 0, single buffered']
    %6 = vsyncpa [#allocation3], 0
    %7 = vsyncpa [#allocation4], 0
    // Predicated region
    $region2: #{tpu_custom_call.1} parent=1 // pred_check
      _
    $region3: #{tpu_custom_call.1} parent=1 // pred_check_branch
      %9 = sbr.rel (0) target = $region5
    $region4: #{tpu_custom_call.1} parent=1 // pred_region
      %11 = vsyncadd [#allocation3], 0
      %s13 = sshll.u32 %s0, 4
      %s14 = int_to_ptr.hbm [resolvable:$true] %s13
      %s15 = sshll.u32 [#allocation2], 4
      %s16 = int_to_ptr.vmem [resolvable:$true] %s15
      %18 = dma.hbm_to_vmem [thread:$0]  %s14, 256, %s16, [#allocation3]
    $region5: #{tpu_custom_call.1} parent=1 // pred_fallthru
      _
    // Predicated region
    $region6: #{tpu_custom_call.1} parent=1 // pred_check
      _
    $region7: #{tpu_custom_call.1} parent=1 // pred_check_branch
      %20 = sbr.rel (0) target = $region9
    $region8: #{tpu_custom_call.1} parent=1 // pred_region
      %22 = dma.done [#allocation3], 256
    $region9: #{tpu_custom_call.1} parent=1 // pred_fallthru
      _
    %v23 = vld [vmem:[#allocation2] sm:$0xff]
    %v24 = vld [vmem:[#allocation2 + $0x8] sm:$0xff]
    %v25 = vadd.f32 %v23, %v24
    %26 = vadd.xlane.f32.xlu0 %v25
    %v27 = vpop.xlane.xlu0 %26
    %v28 = vmul.f32 %v27, 0.00390625
    %v29 = vsub.f32 %v23, %v28
    %v30 = vsub.f32 %v24, %v28
    %v31 = vmul.f32 %v29, %v29
    %v32 = vmul.f32 %v30, %v30
    %v33 = vadd.f32 %v31, %v32
    %34 = vadd.xlane.f32.xlu0 %v33
    %v35 = vpop.xlane.xlu0 %34
    %v36 = vmul.f32 %v35, 0.00390625
    %v37 = vadd.f32 %v36, 1e-05
    %v38 = vrcp.pop %v37
    %v39 = vmul.f32 %v37, %v38
    %v40 = vsub.f32 1.0, %v39
    %v41 = vmul.f32 %v38, %v40
    %v42 = vadd.f32 %v38, %v41
    %vm43 = vweird.f32 %v37
    %vm44 = vweird.f32 %v38
    %vm45 = vmor %vm43, %vm44
    %v46 = vsel %vm45, %v38, %v42
    %v47 = vand.u32 2147483647, %v37
    %vm48 = vcmp.eq.f32.partialorder %v47, 8.507059e+37
    %v49 = vand.u32 %v37, 2147483648
    %v50 = vor.u32 1.1754944e-38, %v49
    %v51 = vsel %vm48, %v50, %v46
    %v52 = vmul.f32 %v31, %v51
    %v53 = vmul.f32 %v32, %v51
    %v54 = vmul.f32 %v23, 0.0001
    %v55 = vmul.f32 %v24, 0.0001
    %v56 = vadd.f32 %v52, %v54
    %v57 = vadd.f32 %v53, %v55
    %v58 = vmul.f32 %v56, 1.442695
    %v59 = vpow.pop %v58
    %v60 = vmul.f32 %v57, 1.442695
    %v61 = vpow.pop %v60
    %v62 = vadd.f32 %v59, 1.0
    %v63 = vadd.f32 %v61, 1.0
    %v64 = vrcp.pop %v62
    %v65 = vmul.f32 %v62, %v64
    %v66 = vsub.f32 1.0, %v65
    %v67 = vmul.f32 %v64, %v66
    %v68 = vadd.f32 %v64, %v67
    %vm69 = vweird.f32 %v62
    %vm70 = vweird.f32 %v64
    %vm71 = vmor %vm69, %vm70
    %v72 = vsel %vm71, %v64, %v68
    %v73 = vand.u32 2147483647, %v62
    %vm74 = vcmp.eq.f32.partialorder %v73, 8.507059e+37
    %v75 = vand.u32 %v62, 2147483648
    %v76 = vor.u32 1.1754944e-38, %v75
    %v77 = vsel %vm74, %v76, %v72
    %v78 = vrcp.pop %v63
    %v79 = vmul.f32 %v63, %v78
    %v80 = vsub.f32 1.0, %v79
    %v81 = vmul.f32 %v78, %v80
    %v82 = vadd.f32 %v78, %v81
    %vm83 = vweird.f32 %v63
    %vm84 = vweird.f32 %v78
    %vm85 = vmor %vm83, %vm84
    %v86 = vsel %vm85, %v78, %v82
    %v87 = vand.u32 2147483647, %v63
    %vm88 = vcmp.eq.f32.partialorder %v87, 8.507059e+37
    %v89 = vand.u32 %v63, 2147483648
    %v90 = vor.u32 1.1754944e-38, %v89
    %v91 = vsel %vm88, %v90, %v86
    %v92 = vmul.f32 %v23, %v77
    %v93 = vmul.f32 %v24, %v91
    %94 = vst [vmem:[#allocation5] sm:$0xff] %v92
    %95 = vst [vmem:[#allocation5 + $0x8] sm:$0xff] %v93
    // Predicated region
    $region10: #{tpu_custom_call.1} parent=1 // pred_check
      _
    $region11: #{tpu_custom_call.1} parent=1 // pred_check_branch
      %97 = sbr.rel (0) target = $region13
    $region12: #{tpu_custom_call.1} parent=1 // pred_region
      %99 = vsyncadd [#allocation4], 0
      %s101 = sshll.u32 [#allocation5], 4
      %s102 = int_to_ptr.vmem [resolvable:$true] %s101
      %s103 = sshll.u32 %s1, 4
      %s104 = int_to_ptr.hbm [resolvable:$true] %s103
      %106 = dma.vmem_to_hbm [thread:$0]  %s102, 256, %s104, [#allocation4]
    $region13: #{tpu_custom_call.1} parent=1 // pred_fallthru
      _
    // Predicated region
    $region14: #{tpu_custom_call.1} parent=1 // pred_check
      _
    $region15: #{tpu_custom_call.1} parent=1 // pred_check_branch
      %108 = sbr.rel (0) target = $region17
    $region16: #{tpu_custom_call.1} parent=1 // pred_region
      %110 = dma.done [#allocation4], 256
    $region17: #{tpu_custom_call.1} parent=1 // pred_fallthru
      _
    %111 = vsyncpa [#allocation3], 1
    %112 = vsyncpa [#allocation4], 1

</llo_original>
